<compile_context>
chip_gen: v6e
topology: v6e:2x2x1
jax: 0.10.0
libtpu: 0.0.40
codegen_flags: <defaults>
</compile_context>

<pallas_src>
import functools

import jax
import jax.numpy as jnp
from jax import lax
from jax.experimental import pallas as pl
from jax.experimental.pallas import tpu as pltpu

_LANES = 128
_SUBLANES = 8


def _round_up(n, m):
    return ((n + m - 1) // m) * m


def qnet_kernel(x_ref, w1_ref, b1_ref, w2_ref, b2_ref, w3_ref, b3_ref, out_ref):
    # x_ref: (TB, obs) batch-major tile straight from HBM.
    # Weights are PyTorch-native (out, in); biases (out, 1).
    # Layer 1 contracts on the last dim of both operands (W1 @ X^T), so the tile
    # transpose rides the MXU/XLU data path instead of a separate HBM pass.
    h1 = lax.dot_general(
        w1_ref[...], x_ref[...],
        dimension_numbers=(((1,), (1,)), ((), ())),
        preferred_element_type=jnp.float32,
    ) + b1_ref[...]
    h1 = jnp.maximum(h1, 0.0)                                         # (mid_p, TB)

    h2 = jnp.dot(w2_ref[...], h1, preferred_element_type=jnp.float32) + b2_ref[...]
    h2 = jnp.maximum(h2, 0.0)                                         # (mid_p, TB)

    out_ref[...] = (
        jnp.dot(w3_ref[...], h2, preferred_element_type=jnp.float32) + b3_ref[...]
    )                                                                 # (act_p, TB)


@functools.partial(jax.jit, static_argnames=("max_batch_tile",))
def qnet_forward(x, params, *, max_batch_tile=8192):
    """x: (batch, observation_size) f32  ->  (batch, action_size) f32."""
    batch, obs = x.shape
    mid = params["w1"].shape[0]
    act = params["w3"].shape[0]

    mid_p = _round_up(mid, _SUBLANES)
    act_p = _round_up(act, _SUBLANES)

    # Pad the tiny weight/bias tensors (few KiB, one-off per call) so hidden and
    # action dims fill whole sublanes.  Padded rows/cols are exact zeros -> inert.
    def pad2(a, rows, cols):
        return jnp.pad(a, ((0, rows - a.shape[0]), (0, cols - a.shape[1])))

    w1 = pad2(params["w1"], mid_p, obs)
    w2 = pad2(params["w2"], mid_p, mid_p)
    w3 = pad2(params["w3"], act_p, mid_p)
    b1 = pad2(params["b1"].reshape(mid, 1), mid_p, 1)
    b2 = pad2(params["b2"].reshape(mid, 1), mid_p, 1)
    b3 = pad2(params["b3"].reshape(act, 1), act_p, 1)

    # Batch-tile selection (lanes = batch):
    #   * batch < 128: pad up to one 128-lane tile (bytes negligible, stores dense)
    #   * else: biggest multiple of 128 up to max_batch_tile, capped near batch/2 so
    #     the "parallel" axis has >= 2 tiles for v7x's two TensorCores.
    xp = x
    if batch < _LANES:
        xp = jnp.pad(x, ((0, _LANES - batch), (0, 0)))
        tb = _LANES
    else:
        tb = min(_round_up(batch, _LANES), max_batch_tile)
        tb = max(_LANES, min(tb, _round_up(pl.cdiv(batch, 2), _LANES)))
    padded_batch = xp.shape[0]
    n_tiles = pl.cdiv(padded_batch, tb)

    resident = lambda a: pl.BlockSpec(a.shape, lambda i: (0, 0))

    out_fm = pl.pallas_call(
        qnet_kernel,
        out_shape=jax.ShapeDtypeStruct((act_p, padded_batch), jnp.float32),
        grid=(n_tiles,),
        in_specs=[
            pl.BlockSpec((tb, obs), lambda i: (i, 0)),   # streamed batch-major x
            resident(w1), resident(b1),                  # weights/biases resident
            resident(w2), resident(b2),
            resident(w3), resident(b3),
        ],
        out_specs=pl.BlockSpec((act_p, tb), lambda i: (0, i)),
        compiler_params=pltpu.CompilerParams(
            dimension_semantics=("parallel",),           # v7x: batch tiles across TCs
        ),
    )(xp, w1, b1, w2, b2, w3, b3)

    # Feature-major, lane-dense output; slice off padding and return batch-major.
    return out_fm[:act, :batch].T


def init_params(key, observation_size, action_size, middle_size=18):
    """PyTorch nn.Linear-style init U(-1/sqrt(fan_in), 1/sqrt(fan_in)); weights are
    stored PyTorch-native (out, in), biases (out,).  All padding is done inside
    qnet_forward."""
    def linear(k, fan_in, fan_out):
        kw, kb = jax.random.split(k)
        bound = 1.0 / jnp.sqrt(jnp.float32(fan_in))
        w = jax.random.uniform(kw, (fan_out, fan_in), jnp.float32, -bound, bound)
        b = jax.random.uniform(kb, (fan_out,), jnp.float32, -bound, bound)
        return w, b

    k1, k2, k3 = jax.random.split(key, 3)
    w1, b1 = linear(k1, observation_size, middle_size)
    w2, b2 = linear(k2, middle_size, middle_size)
    w3, b3 = linear(k3, middle_size, action_size)
    return {"w1": w1, "b1": b1, "w2": w2, "b2": b2, "w3": w3, "b3": b3}


def qnet_reference(x, params):
    """Pure-JAX reference in the PyTorch (batch, features) convention."""
    h1 = jnp.maximum(x @ params["w1"].T + params["b1"], 0.0)
    h2 = jnp.maximum(h1 @ params["w2"].T + params["b2"], 0.0)
    return h2 @ params["w3"].T + params["b3"]


if __name__ == "__main__":
    observation_size = 16
    action_size = 4
    middle_size = 18

    key = jax.random.PRNGKey(0)
    kx1, kx2, kx3, kp = jax.random.split(key, 4)
    params = init_params(kp, observation_size, action_size, middle_size)

    # 1) Large batch: exercises the >=2-tile "parallel" grid + resident weights.
    batch_big = 1024
    x_big = jax.random.normal(kx1, (batch_big, observation_size), jnp.float32)
    out_big = jax.block_until_ready(qnet_forward(x_big, params))
    ref_big = qnet_reference(x_big, params)
    assert out_big.shape == (batch_big, action_size)
    assert jnp.allclose(out_big, ref_big, atol=1e-4, rtol=1e-4), "mismatch (batched)"

    # 2) Tiny batch (per-step RL usage): single 128-lane padded tile.
    batch_small = 8
    x_small = jax.random.normal(kx2, (batch_small, observation_size), jnp.float32)
    out_small = jax.block_until_ready(qnet_forward(x_small, params))
    ref_small = qnet_reference(x_small, params)
    assert out_small.shape == (batch_small, action_size)
    assert jnp.allclose(out_small, ref_small, atol=1e-4, rtol=1e-4), "mismatch (small)"

    # 3) Ragged batch: exercises Pallas partial-block masking (no wrapper pad pass).
    batch_ragged = 1000
    x_rag = jax.random.normal(kx3, (batch_ragged, observation_size), jnp.float32)
    out_rag = jax.block_until_ready(qnet_forward(x_rag, params))
    ref_rag = qnet_reference(x_rag, params)
    assert out_rag.shape == (batch_ragged, action_size)
    assert jnp.allclose(out_rag, ref_rag, atol=1e-4, rtol=1e-4), "mismatch (ragged)"

    print("KERNEL_OK")
</pallas_src>

<mosaic_0001>
module attributes {stable_mosaic.version = 11 : i64} {
  func.func @qnet_kernel(%arg0: i32, %arg1: memref<512x16xf32, #tpu.memory_space<vmem>>, %arg2: memref<24x16xf32, #tpu.memory_space<vmem>>, %arg3: memref<24x1xf32, #tpu.memory_space<vmem>>, %arg4: memref<24x24xf32, #tpu.memory_space<vmem>>, %arg5: memref<24x1xf32, #tpu.memory_space<vmem>>, %arg6: memref<8x24xf32, #tpu.memory_space<vmem>>, %arg7: memref<8x1xf32, #tpu.memory_space<vmem>>, %arg8: memref<8x512xf32, #tpu.memory_space<vmem>>) attributes {dimension_semantics = [#tpu.dimension_semantics<parallel>], iteration_bounds = array<i64: 2>, scalar_prefetch = 0 : i64, scratch_operands = 0 : i64, tpu.core_type = #tpu.core_type<tc>, window_params = [{transform_indices = @transform_0, window_bounds = array<i64: 512, 16>}, {pipeline_mode = #tpu.pipeline_mode<synchronous>, transform_indices = @transform_1, window_bounds = array<i64: 24, 16>}, {pipeline_mode = #tpu.pipeline_mode<synchronous>, transform_indices = @transform_2, window_bounds = array<i64: 24, 1>}, {pipeline_mode = #tpu.pipeline_mode<synchronous>, transform_indices = @transform_3, window_bounds = array<i64: 24, 24>}, {pipeline_mode = #tpu.pipeline_mode<synchronous>, transform_indices = @transform_4, window_bounds = array<i64: 24, 1>}, {pipeline_mode = #tpu.pipeline_mode<synchronous>, transform_indices = @transform_5, window_bounds = array<i64: 8, 24>}, {pipeline_mode = #tpu.pipeline_mode<synchronous>, transform_indices = @transform_6, window_bounds = array<i64: 8, 1>}, {transform_indices = @transform_7, window_bounds = array<i64: 8, 512>}]} {
    %c0 = arith.constant 0 : index
    %c0_0 = arith.constant 0 : index
    %0 = vector.load %arg2[%c0, %c0_0] : memref<24x16xf32, #tpu.memory_space<vmem>>, vector<24x16xf32>
    %c0_1 = arith.constant 0 : index
    %c0_2 = arith.constant 0 : index
    %1 = vector.load %arg1[%c0_1, %c0_2] : memref<512x16xf32, #tpu.memory_space<vmem>>, vector<512x16xf32>
    %cst = arith.constant dense<0.000000e+00> : vector<24x512xf32>
    %2 = tpu.matmul %0, %1, %cst {dimension_numbers = #tpu.dot_dimension_numbers<[1], [1], [0], [0], [0, 0, 1, 0], [], []>} : vector<24x16xf32>, vector<512x16xf32>, vector<24x512xf32> -> vector<24x512xf32>
    %c0_3 = arith.constant 0 : index
    %c0_4 = arith.constant 0 : index
    %3 = vector.load %arg3[%c0_3, %c0_4] : memref<24x1xf32, #tpu.memory_space<vmem>>, vector<24x1xf32>
    %4 = vector.broadcast %3 : vector<24x1xf32> to vector<24x512xf32>
    %5 = arith.addf %2, %4 : vector<24x512xf32>
    %cst_5 = arith.constant 0.000000e+00 : f32
    %6 = vector.broadcast %cst_5 : f32 to vector<24x512xf32>
    %7 = arith.maximumf %5, %6 : vector<24x512xf32>
    %c0_6 = arith.constant 0 : index
    %c0_7 = arith.constant 0 : index
    %8 = vector.load %arg4[%c0_6, %c0_7] : memref<24x24xf32, #tpu.memory_space<vmem>>, vector<24x24xf32>
    %cst_8 = arith.constant dense<0.000000e+00> : vector<24x512xf32>
    %9 = tpu.matmul %8, %7, %cst_8 {dimension_numbers = #tpu.dot_dimension_numbers<[1], [0], [0], [1], [0, 0, 1, 1], [], []>} : vector<24x24xf32>, vector<24x512xf32>, vector<24x512xf32> -> vector<24x512xf32>
    %c0_9 = arith.constant 0 : index
    %c0_10 = arith.constant 0 : index
    %10 = vector.load %arg5[%c0_9, %c0_10] : memref<24x1xf32, #tpu.memory_space<vmem>>, vector<24x1xf32>
    %11 = vector.broadcast %10 : vector<24x1xf32> to vector<24x512xf32>
    %12 = arith.addf %9, %11 : vector<24x512xf32>
    %cst_11 = arith.constant 0.000000e+00 : f32
    %13 = vector.broadcast %cst_11 : f32 to vector<24x512xf32>
    %14 = arith.maximumf %12, %13 : vector<24x512xf32>
    %c0_12 = arith.constant 0 : index
    %c0_13 = arith.constant 0 : index
    %15 = vector.load %arg6[%c0_12, %c0_13] : memref<8x24xf32, #tpu.memory_space<vmem>>, vector<8x24xf32>
    %cst_14 = arith.constant dense<0.000000e+00> : vector<8x512xf32>
    %16 = tpu.matmul %15, %14, %cst_14 {dimension_numbers = #tpu.dot_dimension_numbers<[1], [0], [0], [1], [0, 0, 1, 1], [], []>} : vector<8x24xf32>, vector<24x512xf32>, vector<8x512xf32> -> vector<8x512xf32>
    %c0_15 = arith.constant 0 : index
    %c0_16 = arith.constant 0 : index
    %17 = vector.load %arg7[%c0_15, %c0_16] : memref<8x1xf32, #tpu.memory_space<vmem>>, vector<8x1xf32>
    %18 = vector.broadcast %17 : vector<8x1xf32> to vector<8x512xf32>
    %19 = arith.addf %16, %18 : vector<8x512xf32>
    %c0_17 = arith.constant 0 : index
    %c0_18 = arith.constant 0 : index
    %20 = vector.load %arg8[%c0_17, %c0_18] : memref<8x512xf32, #tpu.memory_space<vmem>>, vector<8x512xf32>
    tpu.vector_store %arg8[%c0_17, %c0_18], %19 {strides = array<i32>} : memref<8x512xf32, #tpu.memory_space<vmem>>, vector<8x512xf32>,
    return
  }
  func.func @transform_0(%arg0: i32) -> (i32, i32) {
    %c0_i32 = arith.constant 0 : i32
    %c0_i32_0 = arith.constant 0 : i32
    return %arg0, %c0_i32 : i32, i32
  }
  func.func @transform_1(%arg0: i32) -> (i32, i32) {
    %c0_i32 = arith.constant 0 : i32
    %c0_i32_0 = arith.constant 0 : i32
    %c0_i32_1 = arith.constant 0 : i32
    return %c0_i32, %c0_i32_0 : i32, i32
  }
  func.func @transform_2(%arg0: i32) -> (i32, i32) {
    %c0_i32 = arith.constant 0 : i32
    %c0_i32_0 = arith.constant 0 : i32
    %c0_i32_1 = arith.constant 0 : i32
    return %c0_i32, %c0_i32_0 : i32, i32
  }
  func.func @transform_3(%arg0: i32) -> (i32, i32) {
    %c0_i32 = arith.constant 0 : i32
    %c0_i32_0 = arith.constant 0 : i32
    %c0_i32_1 = arith.constant 0 : i32
    return %c0_i32, %c0_i32_0 : i32, i32
  }
  func.func @transform_4(%arg0: i32) -> (i32, i32) {
    %c0_i32 = arith.constant 0 : i32
    %c0_i32_0 = arith.constant 0 : i32
    %c0_i32_1 = arith.constant 0 : i32
    return %c0_i32, %c0_i32_0 : i32, i32
  }
  func.func @transform_5(%arg0: i32) -> (i32, i32) {
    %c0_i32 = arith.constant 0 : i32
    %c0_i32_0 = arith.constant 0 : i32
    %c0_i32_1 = arith.constant 0 : i32
    return %c0_i32, %c0_i32_0 : i32, i32
  }
  func.func @transform_6(%arg0: i32) -> (i32, i32) {
    %c0_i32 = arith.constant 0 : i32
    %c0_i32_0 = arith.constant 0 : i32
    %c0_i32_1 = arith.constant 0 : i32
    return %c0_i32, %c0_i32_0 : i32, i32
  }
  func.func @transform_7(%arg0: i32) -> (i32, i32) {
    %c0_i32 = arith.constant 0 : i32
    %c0_i32_0 = arith.constant 0 : i32
    return %c0_i32, %arg0 : i32, i32
  }
}

</mosaic_0001>

<llo_original>
// kernel: qnet_forward.1
$region0: #{qnet_forward.1}
  #allocation0 [shape = 'u32[]', space=smem, size = 0x4, offset = 0x4, fixed_abs, tag = 'smem constant byte address 0x4 - core index']
  #allocation1 [shape = 'u32[144,128]{1,0:T(1,128)}', space=vmem, size = 0x12000, scoped, tag = 'internal scratch']
  %s0 = inlined_call_operand.vmem [shape: f32[1024,16], index: 0, kind: input, shape index: {}]
  %s1 = inlined_call_operand.vmem [shape: f32[24,16], index: 1, kind: input, shape index: {}]
  %s2 = inlined_call_operand.vmem [shape: f32[24,1], index: 2, kind: input, shape index: {}]
  %s3 = inlined_call_operand.vmem [shape: f32[24,24], index: 3, kind: input, shape index: {}]
  %s4 = inlined_call_operand.vmem [shape: f32[24,1], index: 4, kind: input, shape index: {}]
  %s5 = inlined_call_operand.vmem [shape: f32[8,24], index: 5, kind: input, shape index: {}]
  %s6 = inlined_call_operand.vmem [shape: f32[8,1], index: 6, kind: input, shape index: {}]
  %s7 = inlined_call_operand.vmem [shape: f32[8,1024], index: 7, kind: output, shape index: {}]
  %s8 = sld [smem:[#allocation0]]
  $region61: #{qnet_forward.1} parent=0
    _
  %s10 = ssub.s32 1, %s8
  %s11 = scalar_select 0, %s10, %s8
  loop: start=0, step=1, limit=4
  $region2: #{qnet_forward.1} parent=0 // loop_pre_header
    _
  $region3: #{qnet_forward.1} parent=0 // loop_header
    %s13 = sphi 0, %s17
    %p14 = scmp.ge.s32.totalorder %s13, 4
    %s23 = sphi 0, %s25
    %s26 = sphi 0, %s23
    %s27 = sphi 0, %s26
    %s43 = sphi 0, %s27
    %s47 = sphi 0, %s47
    %s49 = sphi 0, %s47
    %s50 = sphi 0, %s49
    %s64 = sphi 0, %s50
    %s68 = sphi 0, %s68
    %s70 = sphi 0, %s68
    %s71 = sphi 0, %s70
    %s85 = sphi 0, %s71
    %s89 = sphi 0, %s89
    %s91 = sphi 0, %s89
    %s92 = sphi 0, %s91
    %s106 = sphi 0, %s92
    %s110 = sphi 0, %s110
    %s112 = sphi 0, %s110
    %s113 = sphi 0, %s112
    %s127 = sphi 0, %s113
    %s131 = sphi 0, %s131
    %s133 = sphi 0, %s131
    %s134 = sphi 0, %s133
    %s148 = sphi 0, %s134
    %s152 = sphi 0, %s152
    %s154 = sphi 0, %s152
    %s155 = sphi 0, %s154
    %s169 = sphi 0, %s155
    %s175 = sphi 0, %s177
    %s178 = sphi 0, %s175
    %s179 = sphi 0, %s178
    %s195 = sphi 0, %s179
  $region4: #{qnet_forward.1} parent=0 // loop_header_branch
    %16 = sbr.rel (%p14) target = $region8
  $region5: #{qnet_forward.1} parent=0 // loop_body
    %s18 = ssub.s32 %s13, 1
    %s19 = ssub.s32 %s13, 2
    %s20 = sadd.s32 %s13, 1
    %s21 = ssub.s32 %s13, %s20
    %p22 = scmp.eq.s32.totalorder %s21, 0
    %s24 = sadd.s32 %s23, 1
    %s25 = scalar_select %p22, %s23, %s24
    %p28 = pneg %p22
    %p29 = scmp.eq.s32.totalorder %s13, 1
    %p30 = por %p28, %p29
    %p31 = scmp.ne.s32.totalorder %s23, %s26
    %p32 = scmp.eq.s32.totalorder %s13, 0
    %p33 = por %p31, %p32
    %p34 = scmp.ne.s32.totalorder %s23, %s26
    %p35 = scmp.eq.s32.totalorder %s18, 1
    %p36 = por %p34, %p35
    %p37 = scmp.ne.s32.totalorder %s26, %s27
    %p38 = scmp.eq.s32.totalorder %s18, 0
    %p39 = por %p37, %p38
    %p40 = scmp.ne.s32.totalorder %s26, %s27
    %p41 = scmp.eq.s32.totalorder %s19, 1
    %p42 = por %p40, %p41
    %p44 = scmp.ne.s32.totalorder %s27, %s43
    %p45 = scmp.eq.s32.totalorder %s19, 0
    %p46 = por %p44, %p45
    %s48 = sadd.s32 %s47, 1
    %p51 = scmp.eq.s32.totalorder %s13, 1
    %p52 = scmp.ne.s32.totalorder %s47, %s49
    %p53 = scmp.eq.s32.totalorder %s13, 0
    %p54 = por %p52, %p53
    %p55 = scmp.ne.s32.totalorder %s47, %s49
    %p56 = scmp.eq.s32.totalorder %s18, 1
    %p57 = por %p55, %p56
    %p58 = scmp.ne.s32.totalorder %s49, %s50
    %p59 = scmp.eq.s32.totalorder %s18, 0
    %p60 = por %p58, %p59
    %p61 = scmp.ne.s32.totalorder %s49, %s50
    %p62 = scmp.eq.s32.totalorder %s19, 1
    %p63 = por %p61, %p62
    %p65 = scmp.ne.s32.totalorder %s50, %s64
    %p66 = scmp.eq.s32.totalorder %s19, 0
    %p67 = por %p65, %p66
    %s69 = sadd.s32 %s68, 1
    %p72 = scmp.eq.s32.totalorder %s13, 1
    %p73 = scmp.ne.s32.totalorder %s68, %s70
    %p74 = scmp.eq.s32.totalorder %s13, 0
    %p75 = por %p73, %p74
    %p76 = scmp.ne.s32.totalorder %s68, %s70
    %p77 = scmp.eq.s32.totalorder %s18, 1
    %p78 = por %p76, %p77
    %p79 = scmp.ne.s32.totalorder %s70, %s71
    %p80 = scmp.eq.s32.totalorder %s18, 0
    %p81 = por %p79, %p80
    %p82 = scmp.ne.s32.totalorder %s70, %s71
    %p83 = scmp.eq.s32.totalorder %s19, 1
    %p84 = por %p82, %p83
    %p86 = scmp.ne.s32.totalorder %s71, %s85
    %p87 = scmp.eq.s32.totalorder %s19, 0
    %p88 = por %p86, %p87
    %s90 = sadd.s32 %s89, 1
    %p93 = scmp.eq.s32.totalorder %s13, 1
    %p94 = scmp.ne.s32.totalorder %s89, %s91
    %p95 = scmp.eq.s32.totalorder %s13, 0
    %p96 = por %p94, %p95
    %p97 = scmp.ne.s32.totalorder %s89, %s91
    %p98 = scmp.eq.s32.totalorder %s18, 1
    %p99 = por %p97, %p98
    %p100 = scmp.ne.s32.totalorder %s91, %s92
    %p101 = scmp.eq.s32.totalorder %s18, 0
    %p102 = por %p100, %p101
    %p103 = scmp.ne.s32.totalorder %s91, %s92
    %p104 = scmp.eq.s32.totalorder %s19, 1
    %p105 = por %p103, %p104
    %p107 = scmp.ne.s32.totalorder %s92, %s106
    %p108 = scmp.eq.s32.totalorder %s19, 0
    %p109 = por %p107, %p108
    %s111 = sadd.s32 %s110, 1
    %p114 = scmp.eq.s32.totalorder %s13, 1
    %p115 = scmp.ne.s32.totalorder %s110, %s112
    %p116 = scmp.eq.s32.totalorder %s13, 0
    %p117 = por %p115, %p116
    %p118 = scmp.ne.s32.totalorder %s110, %s112
    %p119 = scmp.eq.s32.totalorder %s18, 1
    %p120 = por %p118, %p119
    %p121 = scmp.ne.s32.totalorder %s112, %s113
    %p122 = scmp.eq.s32.totalorder %s18, 0
    %p123 = por %p121, %p122
    %p124 = scmp.ne.s32.totalorder %s112, %s113
    %p125 = scmp.eq.s32.totalorder %s19, 1
    %p126 = por %p124, %p125
    %p128 = scmp.ne.s32.totalorder %s113, %s127
    %p129 = scmp.eq.s32.totalorder %s19, 0
    %p130 = por %p128, %p129
    %s132 = sadd.s32 %s131, 1
    %p135 = scmp.eq.s32.totalorder %s13, 1
    %p136 = scmp.ne.s32.totalorder %s131, %s133
    %p137 = scmp.eq.s32.totalorder %s13, 0
    %p138 = por %p136, %p137
    %p139 = scmp.ne.s32.totalorder %s131, %s133
    %p140 = scmp.eq.s32.totalorder %s18, 1
    %p141 = por %p139, %p140
    %p142 = scmp.ne.s32.totalorder %s133, %s134
    %p143 = scmp.eq.s32.totalorder %s18, 0
    %p144 = por %p142, %p143
    %p145 = scmp.ne.s32.totalorder %s133, %s134
    %p146 = scmp.eq.s32.totalorder %s19, 1
    %p147 = por %p145, %p146
    %p149 = scmp.ne.s32.totalorder %s134, %s148
    %p150 = scmp.eq.s32.totalorder %s19, 0
    %p151 = por %p149, %p150
    %s153 = sadd.s32 %s152, 1
    %p156 = scmp.eq.s32.totalorder %s13, 1
    %p157 = scmp.ne.s32.totalorder %s152, %s154
    %p158 = scmp.eq.s32.totalorder %s13, 0
    %p159 = por %p157, %p158
    %p160 = scmp.ne.s32.totalorder %s152, %s154
    %p161 = scmp.eq.s32.totalorder %s18, 1
    %p162 = por %p160, %p161
    %p163 = scmp.ne.s32.totalorder %s154, %s155
    %p164 = scmp.eq.s32.totalorder %s18, 0
    %p165 = por %p163, %p164
    %p166 = scmp.ne.s32.totalorder %s154, %s155
    %p167 = scmp.eq.s32.totalorder %s19, 1
    %p168 = por %p166, %p167
    %p170 = scmp.ne.s32.totalorder %s155, %s169
    %p171 = scmp.eq.s32.totalorder %s19, 0
    %p172 = por %p170, %p171
    %s173 = ssub.s32 %s13, %s20
    %p174 = scmp.eq.s32.totalorder %s173, 0
    %s176 = sadd.s32 %s175, 1
    %s177 = scalar_select %p174, %s175, %s176
    %p180 = pneg %p174
    %p181 = scmp.eq.s32.totalorder %s13, 1
    %p182 = por %p180, %p181
    %p183 = scmp.ne.s32.totalorder %s175, %s178
    %p184 = scmp.eq.s32.totalorder %s13, 0
    %p185 = por %p183, %p184
    %p186 = scmp.ne.s32.totalorder %s175, %s178
    %p187 = scmp.eq.s32.totalorder %s18, 1
    %p188 = por %p186, %p187
    %p189 = scmp.ne.s32.totalorder %s178, %s179
    %p190 = scmp.eq.s32.totalorder %s18, 0
    %p191 = por %p189, %p190
    %p192 = scmp.ne.s32.totalorder %s178, %s179
    %p193 = scmp.eq.s32.totalorder %s19, 1
    %p194 = por %p192, %p193
    %p196 = scmp.ne.s32.totalorder %s179, %s195
    %p197 = scmp.eq.s32.totalorder %s19, 0
    %p198 = por %p196, %p197
    %p199 = scmp.le.s32.totalorder 1, %s13
    %p200 = scmp.lt.s32.totalorder %s13, 3
    %p201 = pnand %p199, %p200
    %p202 = pneg %p201
    // Predicated region
    $region9: #{qnet_forward.1} parent=5 // pred_check
      _
    $region10: #{qnet_forward.1} parent=5 // pred_check_branch
      %204 = sbr.rel (%p201) target = $region12
    $region11: #{qnet_forward.1} parent=5 // pred_region
      %s205 = ssub.s32 %s13, 1
      // Predicated region
      $region13: #{qnet_forward.1} parent=11 // pred_check
        %p206 = pneg %p60
      $region14: #{qnet_forward.1} parent=11 // pred_check_branch
        %208 = sbr.rel (%p206) target = $region16
      $region15: #{qnet_forward.1} parent=11 // pred_region
        _
      $region16: #{qnet_forward.1} parent=11 // pred_fallthru
        _
      // Predicated region
      $region17: #{qnet_forward.1} parent=11 // pred_check
        %p209 = pneg %p81
      $region18: #{qnet_forward.1} parent=11 // pred_check_branch
        %211 = sbr.rel (%p209) target = $region20
      $region19: #{qnet_forward.1} parent=11 // pred_region
        _
      $region20: #{qnet_forward.1} parent=11 // pred_fallthru
        _
      // Predicated region
      $region21: #{qnet_forward.1} parent=11 // pred_check
        %p212 = pneg %p102
      $region22: #{qnet_forward.1} parent=11 // pred_check_branch
        %214 = sbr.rel (%p212) target = $region24
      $region23: #{qnet_forward.1} parent=11 // pred_region
        _
      $region24: #{qnet_forward.1} parent=11 // pred_fallthru
        _
      // Predicated region
      $region25: #{qnet_forward.1} parent=11 // pred_check
        %p215 = pneg %p123
      $region26: #{qnet_forward.1} parent=11 // pred_check_branch
        %217 = sbr.rel (%p215) target = $region28
      $region27: #{qnet_forward.1} parent=11 // pred_region
        _
      $region28: #{qnet_forward.1} parent=11 // pred_fallthru
        _
      // Predicated region
      $region29: #{qnet_forward.1} parent=11 // pred_check
        %p218 = pneg %p144
      $region30: #{qnet_forward.1} parent=11 // pred_check_branch
        %220 = sbr.rel (%p218) target = $region32
      $region31: #{qnet_forward.1} parent=11 // pred_region
        _
      $region32: #{qnet_forward.1} parent=11 // pred_fallthru
        _
      // Predicated region
      $region33: #{qnet_forward.1} parent=11 // pred_check
        %p221 = pneg %p165
      $region34: #{qnet_forward.1} parent=11 // pred_check_branch
        %223 = sbr.rel (%p221) target = $region36
      $region35: #{qnet_forward.1} parent=11 // pred_region
        _
      $region36: #{qnet_forward.1} parent=11 // pred_fallthru
        _
    $region12: #{qnet_forward.1} parent=5 // pred_fallthru
      _
    %p224 = scmp.lt.s32.totalorder %s13, 2
    // Predicated region
    $region37: #{qnet_forward.1} parent=5 // pred_check
      %p225 = pneg %p224
    $region38: #{qnet_forward.1} parent=5 // pred_check_branch
      %227 = sbr.rel (%p225) target = $region40
    $region39: #{qnet_forward.1} parent=5 // pred_region
      // Predicated region
      $region41: #{qnet_forward.1} parent=39 // pred_check
        %p228 = pneg %p33
      $region42: #{qnet_forward.1} parent=39 // pred_check_branch
        %230 = sbr.rel (%p228) target = $region44
      $region43: #{qnet_forward.1} parent=39 // pred_region
        %s231 = smul.u32 64, %s13
        %p232 = scmp.lt.s32.totalorder %s231, 127
        %s233 = scalar_select %p232, %s231, 127
        %s234 = smul.addr %s233, 8
        %s235 = scalar_lea.vmem %s0, %s234
        %s236 = smul.u32 64, %s13
      $region44: #{qnet_forward.1} parent=39 // pred_fallthru
        _
    $region40: #{qnet_forward.1} parent=5 // pred_fallthru
      _
    %p237 = scmp.le.s32.totalorder 1, %s13
    %p238 = scmp.lt.s32.totalorder %s13, 3
    %p239 = pnand %p237, %p238
    %p240 = pneg %p239
    // Predicated region
    $region45: #{qnet_forward.1} parent=5 // pred_check
      _
    $region46: #{qnet_forward.1} parent=5 // pred_check_branch
      %242 = sbr.rel (%p239) target = $region48
    $region47: #{qnet_forward.1} parent=5 // pred_region
      %s243 = ssub.s32 %s13, 1
      %s244 = smul.u32 64, %s18
      %p245 = scmp.lt.s32.totalorder %s244, 127
      %s246 = scalar_select %p245, %s244, 127
      %s247 = smul.addr %s246, 8
      %s248 = scalar_lea.vmem %s0, %s247
      %p249 = pneg %p39
      %p250 = pneg %p36
      %p251 = pneg %p60
      %p252 = pneg %p57
      %p253 = pneg %p81
      %p254 = pneg %p78
      %p255 = pneg %p102
      %p256 = pneg %p99
      %p257 = pneg %p123
      %p258 = pneg %p120
      %p259 = pneg %p144
      %p260 = pneg %p141
      %p261 = pneg %p165
      %p262 = pneg %p162
      %p263 = pneg %p191
      %p264 = pneg %p188
      %s265 = smul.u32 4, %s18
      %p266 = scmp.lt.s32.totalorder %s265, 7
      %s267 = scalar_select %p266, %s265, 7
      %s268 = smul.addr %s267, 8
      %s269 = scalar_lea.vmem %s7, %s268
      %s270 = smul.u32 64, %s18
      %p271 = scmp.lt.s32.totalorder %s270, 127
      %s272 = scalar_select %p271, %s270, 127
      %s273 = smul.addr %s272, 8
      %s274 = scalar_lea.vmem %s0, %s273
      %s275 = smul.u32 64, %s18
      %s276 = smul.u32 4, %s18
      %p277 = scmp.lt.s32.totalorder %s276, 7
      %s278 = scalar_select %p277, %s276, 7
      %s279 = smul.addr %s278, 8
      %s280 = scalar_lea.vmem %s7, %s279
      %s281 = smul.u32 4, %s18
      %v282 = vld [vmem:[%s1] sm:$0xff]
      %v283 = vld [vmem:[%s1 + $0x8] sm:$0xff]
      %v284 = vld [vmem:[%s1 + $0x10] sm:$0xff]
      %v285 = vld [vmem:[%s274] sm:$0xff]
      %v286 = vld [vmem:[%s274 + $0x8] sm:$0xff]
      %v287 = vld [vmem:[%s274 + $0x10] sm:$0xff]
      %v288 = vld [vmem:[%s274 + $0x18] sm:$0xff]
      %v289 = vld [vmem:[%s274 + $0x20] sm:$0xff]
      %v290 = vld [vmem:[%s274 + $0x28] sm:$0xff]
      %v291 = vld [vmem:[%s274 + $0x30] sm:$0xff]
      %v292 = vld [vmem:[%s274 + $0x38] sm:$0xff]
      %v293 = vld [vmem:[%s274 + $0x40] sm:$0xff]
      %v294 = vld [vmem:[%s274 + $0x48] sm:$0xff]
      %v295 = vld [vmem:[%s274 + $0x50] sm:$0xff]
      %v296 = vld [vmem:[%s274 + $0x58] sm:$0xff]
      %v297 = vld [vmem:[%s274 + $0x60] sm:$0xff]
      %v298 = vld [vmem:[%s274 + $0x68] sm:$0xff]
      %v299 = vld [vmem:[%s274 + $0x70] sm:$0xff]
      %v300 = vld [vmem:[%s274 + $0x78] sm:$0xff]
      %v301 = vld [vmem:[%s274 + $0x80] sm:$0xff]
      %v302 = vld [vmem:[%s274 + $0x88] sm:$0xff]
      %v303 = vld [vmem:[%s274 + $0x90] sm:$0xff]
      %v304 = vld [vmem:[%s274 + $0x98] sm:$0xff]
      %v305 = vld [vmem:[%s274 + $0xa0] sm:$0xff]
      %v306 = vld [vmem:[%s274 + $0xa8] sm:$0xff]
      %v307 = vld [vmem:[%s274 + $0xb0] sm:$0xff]
      %v308 = vld [vmem:[%s274 + $0xb8] sm:$0xff]
      %v309 = vld [vmem:[%s274 + $0xc0] sm:$0xff]
      %v310 = vld [vmem:[%s274 + $0xc8] sm:$0xff]
      %v311 = vld [vmem:[%s274 + $0xd0] sm:$0xff]
      %v312 = vld [vmem:[%s274 + $0xd8] sm:$0xff]
      %v313 = vld [vmem:[%s274 + $0xe0] sm:$0xff]
      %v314 = vld [vmem:[%s274 + $0xe8] sm:$0xff]
      %v315 = vld [vmem:[%s274 + $0xf0] sm:$0xff]
      %v316 = vld [vmem:[%s274 + $0xf8] sm:$0xff]
      %v317 = vld [vmem:[%s274 + $0x100] sm:$0xff]
      %v318 = vld [vmem:[%s274 + $0x108] sm:$0xff]
      %v319 = vld [vmem:[%s274 + $0x110] sm:$0xff]
      %v320 = vld [vmem:[%s274 + $0x118] sm:$0xff]
      %v321 = vld [vmem:[%s274 + $0x120] sm:$0xff]
      %v322 = vld [vmem:[%s274 + $0x128] sm:$0xff]
      %v323 = vld [vmem:[%s274 + $0x130] sm:$0xff]
      %v324 = vld [vmem:[%s274 + $0x138] sm:$0xff]
      %v325 = vld [vmem:[%s274 + $0x140] sm:$0xff]
      %v326 = vld [vmem:[%s274 + $0x148] sm:$0xff]
      %v327 = vld [vmem:[%s274 + $0x150] sm:$0xff]
      %v328 = vld [vmem:[%s274 + $0x158] sm:$0xff]
      %v329 = vld [vmem:[%s274 + $0x160] sm:$0xff]
      %v330 = vld [vmem:[%s274 + $0x168] sm:$0xff]
      %v331 = vld [vmem:[%s274 + $0x170] sm:$0xff]
      %v332 = vld [vmem:[%s274 + $0x178] sm:$0xff]
      %v333 = vld [vmem:[%s274 + $0x180] sm:$0xff]
      %v334 = vld [vmem:[%s274 + $0x188] sm:$0xff]
      %v335 = vld [vmem:[%s274 + $0x190] sm:$0xff]
      %v336 = vld [vmem:[%s274 + $0x198] sm:$0xff]
      %v337 = vld [vmem:[%s274 + $0x1a0] sm:$0xff]
      %v338 = vld [vmem:[%s274 + $0x1a8] sm:$0xff]
      %v339 = vld [vmem:[%s274 + $0x1b0] sm:$0xff]
      %v340 = vld [vmem:[%s274 + $0x1b8] sm:$0xff]
      %v341 = vld [vmem:[%s274 + $0x1c0] sm:$0xff]
      %v342 = vld [vmem:[%s274 + $0x1c8] sm:$0xff]
      %v343 = vld [vmem:[%s274 + $0x1d0] sm:$0xff]
      %v344 = vld [vmem:[%s274 + $0x1d8] sm:$0xff]
      %v345 = vld [vmem:[%s274 + $0x1e0] sm:$0xff]
      %v346 = vld [vmem:[%s274 + $0x1e8] sm:$0xff]
      %v347 = vld [vmem:[%s274 + $0x1f0] sm:$0xff]
      %v348 = vld [vmem:[%s274 + $0x1f8] sm:$0xff]
      %v349 = vld [vmem:[%s2] sm:$0xff]
      %v350 = vld [vmem:[%s2 + $0x8] sm:$0xff]
      %v351 = vld [vmem:[%s2 + $0x10] sm:$0xff]
      %353 = vset.pattern.permute.xlu0 0
      %354 = vperm.xlu0 %353, %v349
      %v355 = vpop.permute.xlu0 %354
      %358 = vset.pattern.permute.xlu0 0
      %359 = vperm.xlu0 %358, %v350
      %v360 = vpop.permute.xlu0 %359
      %363 = vset.pattern.permute.xlu0 0
      %364 = vperm.xlu0 %363, %v351
      %v365 = vpop.permute.xlu0 %364
      %vm367 = vcmask 130048
      %v369 = vsel %vm367, %v282, 0
      %v372 = vsel %vm367, %v283, 0
      %v375 = vsel %vm367, %v284, 0
      %v378 = vsel %vm367, %v285, 0
      %v381 = vsel %vm367, %v286, 0
      %v384 = vsel %vm367, %v287, 0
      %v387 = vsel %vm367, %v288, 0
      %v390 = vsel %vm367, %v289, 0
      %v393 = vsel %vm367, %v290, 0
      %v396 = vsel %vm367, %v291, 0
      %v399 = vsel %vm367, %v292, 0
      %v402 = vsel %vm367, %v293, 0
      %v405 = vsel %vm367, %v294, 0
      %v408 = vsel %vm367, %v295, 0
      %v411 = vsel %vm367, %v296, 0
      %v414 = vsel %vm367, %v297, 0
      %v417 = vsel %vm367, %v298, 0
      %v420 = vsel %vm367, %v299, 0
      %v423 = vsel %vm367, %v300, 0
      %v426 = vsel %vm367, %v301, 0
      %v429 = vsel %vm367, %v302, 0
      %v432 = vsel %vm367, %v303, 0
      %v435 = vsel %vm367, %v304, 0
      %v438 = vsel %vm367, %v305, 0
      %v441 = vsel %vm367, %v306, 0
      %v444 = vsel %vm367, %v307, 0
      %v447 = vsel %vm367, %v308, 0
      %v450 = vsel %vm367, %v309, 0
      %v453 = vsel %vm367, %v310, 0
      %v456 = vsel %vm367, %v311, 0
      %v459 = vsel %vm367, %v312, 0
      %v462 = vsel %vm367, %v313, 0
      %v465 = vsel %vm367, %v314, 0
      %v468 = vsel %vm367, %v315, 0
      %v471 = vsel %vm367, %v316, 0
      %v474 = vsel %vm367, %v317, 0
      %v477 = vsel %vm367, %v318, 0
      %v480 = vsel %vm367, %v319, 0
      %v483 = vsel %vm367, %v320, 0
      %v486 = vsel %vm367, %v321, 0
      %v489 = vsel %vm367, %v322, 0
      %v492 = vsel %vm367, %v323, 0
      %v495 = vsel %vm367, %v324, 0
      %v498 = vsel %vm367, %v325, 0
      %v501 = vsel %vm367, %v326, 0
      %v504 = vsel %vm367, %v327, 0
      %v507 = vsel %vm367, %v328, 0
      %v510 = vsel %vm367, %v329, 0
      %v513 = vsel %vm367, %v330, 0
      %v516 = vsel %vm367, %v331, 0
      %v519 = vsel %vm367, %v332, 0
      %v522 = vsel %vm367, %v333, 0
      %v525 = vsel %vm367, %v334, 0
      %v528 = vsel %vm367, %v335, 0
      %v531 = vsel %vm367, %v336, 0
      %v534 = vsel %vm367, %v337, 0
      %v537 = vsel %vm367, %v338, 0
      %v540 = vsel %vm367, %v339, 0
      %v543 = vsel %vm367, %v340, 0
      %v546 = vsel %vm367, %v341, 0
      %v549 = vsel %vm367, %v342, 0
      %v552 = vsel %vm367, %v343, 0
      %v555 = vsel %vm367, %v344, 0
      %v558 = vsel %vm367, %v345, 0
      %v561 = vsel %vm367, %v346, 0
      %v564 = vsel %vm367, %v347, 0
      %v567 = vsel %vm367, %v348, 0
      %569 = vmatprep.subr.mxu0 0.0
      %570 = vmatpush1.xpose.msra.mxu0 %v423
      %571 = vmatprep.subr.mxu0 0.0
      %572 = vmatpush1.xpose.msra.mxu0 %v420
      %573 = vmatprep.subr.mxu0 0.0
      %574 = vmatpush1.xpose.msra.mxu0 %v417
      %575 = vmatprep.subr.mxu0 0.0
      %576 = vmatpush1.xpose.msra.mxu0 %v414
      %577 = vmatprep.subr.mxu0 0.0
      %578 = vmatpush1.xpose.msra.mxu0 %v411
      %579 = vmatprep.subr.mxu0 0.0
      %580 = vmatpush1.xpose.msra.mxu0 %v408
      %581 = vmatprep.subr.mxu0 0.0
      %582 = vmatpush1.xpose.msra.mxu0 %v405
      %583 = vmatprep.subr.mxu0 0.0
      %584 = vmatpush1.xpose.msra.mxu0 %v402
      %585 = vmatprep.subr.mxu0 0.0
      %586 = vmatpush1.xpose.msra.mxu0 %v399
      %587 = vmatprep.subr.mxu0 0.0
      %588 = vmatpush1.xpose.msra.mxu0 %v396
      %589 = vmatprep.subr.mxu0 0.0
      %590 = vmatpush1.xpose.msra.mxu0 %v393
      %591 = vmatprep.subr.mxu0 0.0
      %592 = vmatpush1.xpose.msra.mxu0 %v390
      %593 = vmatprep.subr.mxu0 0.0
      %594 = vmatpush1.xpose.msra.mxu0 %v387
      %595 = vmatprep.subr.mxu0 0.0
      %596 = vmatpush1.xpose.msra.mxu0 %v384
      %597 = vmatprep.subr.mxu0 0.0
      %598 = vmatpush1.xpose.msra.mxu0 %v381
      %599 = vmatprep.subr.mxu0 0.0
      %600 = vmatpush1.xpose.msra.mxu0 %v378
      %601 = vmatprep.subr.mxu0 0.0
      %602 = vmatpush2.xpose.msra.mxu0 %v471
      %603 = vmatprep.subr.mxu0 0.0
      %604 = vmatpush2.xpose.msra.mxu0 %v468
      %605 = vmatprep.subr.mxu0 0.0
      %606 = vmatpush2.xpose.msra.mxu0 %v465
      %607 = vmatprep.subr.mxu0 0.0
      %608 = vmatpush2.xpose.msra.mxu0 %v462
      %609 = vmatprep.subr.mxu0 0.0
      %610 = vmatpush2.xpose.msra.mxu0 %v459
      %611 = vmatprep.subr.mxu0 0.0
      %612 = vmatpush2.xpose.msra.mxu0 %v456
      %613 = vmatprep.subr.mxu0 0.0
      %614 = vmatpush2.xpose.msra.mxu0 %v453
      %615 = vmatprep.subr.mxu0 0.0
      %616 = vmatpush2.xpose.msra.mxu0 %v450
      %617 = vmatprep.subr.mxu0 0.0
      %618 = vmatpush2.xpose.msra.mxu0 %v447
      %619 = vmatprep.subr.mxu0 0.0
      %620 = vmatpush2.xpose.msra.mxu0 %v444
      %621 = vmatprep.subr.mxu0 0.0
      %622 = vmatpush2.xpose.msra.mxu0 %v441
      %623 = vmatprep.subr.mxu0 0.0
      %624 = vmatpush2.xpose.msra.mxu0 %v438
      %625 = vmatprep.subr.mxu0 0.0
      %626 = vmatpush2.xpose.msra.mxu0 %v435
      %627 = vmatprep.subr.mxu0 0.0
      %628 = vmatpush2.xpose.msra.mxu0 %v432
      %629 = vmatprep.subr.mxu0 0.0
      %630 = vmatpush2.xpose.msra.mxu0 %v429
      %631 = vmatprep.subr.mxu0 0.0
      %632 = vmatpush2.xpose.msra.mxu0 %v426
      %633 = vmatprep.mubr.f32.mxu0 0.0
      %634 = vmatmul.mubr.f32.gmra.mxu0 %v369
      %v635 = vpop.f32.mrf.mxu0
      %v636 = vadd.f32 %v355, %v635
      %v637 = vpop.f32.mrf.mxu0
      %v638 = vadd.f32 %v355, %v637
      %639 = vmatprep.mubr.f32.mxu0 0.0
      %640 = vmatmul.mubr.f32.gmra.mxu0 %v372
      %v641 = vpop.f32.mrf.mxu0
      %v642 = vadd.f32 %v360, %v641
      %v643 = vpop.f32.mrf.mxu0
      %v644 = vadd.f32 %v360, %v643
      %645 = vmatprep.mubr.f32.mxu0 0.0
      %646 = vmatmul.mubr.f32.gmra.mxu0 %v375
      %v647 = vpop.f32.mrf.mxu0
      %v648 = vadd.f32 %v365, %v647
      %v649 = vpop.f32.mrf.mxu0
      %v650 = vadd.f32 %v365, %v649
      %651 = vdwg.mxu0
      %652 = vmatprep.subr.mxu0 0.0
      %653 = vmatpush1.xpose.msra.mxu0 %v519
      %654 = vmatprep.subr.mxu0 0.0
      %655 = vmatpush1.xpose.msra.mxu0 %v516
      %656 = vmatprep.subr.mxu0 0.0
      %657 = vmatpush1.xpose.msra.mxu0 %v513
      %658 = vmatprep.subr.mxu0 0.0
      %659 = vmatpush1.xpose.msra.mxu0 %v510
      %660 = vmatprep.subr.mxu0 0.0
      %661 = vmatpush1.xpose.msra.mxu0 %v507
      %662 = vmatprep.subr.mxu0 0.0
      %663 = vmatpush1.xpose.msra.mxu0 %v504
      %664 = vmatprep.subr.mxu0 0.0
      %665 = vmatpush1.xpose.msra.mxu0 %v501
      %666 = vmatprep.subr.mxu0 0.0
      %667 = vmatpush1.xpose.msra.mxu0 %v498
      %668 = vmatprep.subr.mxu0 0.0
      %669 = vmatpush1.xpose.msra.mxu0 %v495
      %670 = vmatprep.subr.mxu0 0.0
      %671 = vmatpush1.xpose.msra.mxu0 %v492
      %672 = vmatprep.subr.mxu0 0.0
      %673 = vmatpush1.xpose.msra.mxu0 %v489
      %674 = vmatprep.subr.mxu0 0.0
      %675 = vmatpush1.xpose.msra.mxu0 %v486
      %676 = vmatprep.subr.mxu0 0.0
      %677 = vmatpush1.xpose.msra.mxu0 %v483
      %678 = vmatprep.subr.mxu0 0.0
      %679 = vmatpush1.xpose.msra.mxu0 %v480
      %680 = vmatprep.subr.mxu0 0.0
      %681 = vmatpush1.xpose.msra.mxu0 %v477
      %682 = vmatprep.subr.mxu0 0.0
      %683 = vmatpush1.xpose.msra.mxu0 %v474
      %684 = vmatprep.subr.mxu0 0.0
      %685 = vmatpush2.xpose.msra.mxu0 %v567
      %686 = vmatprep.subr.mxu0 0.0
      %687 = vmatpush2.xpose.msra.mxu0 %v564
      %688 = vmatprep.subr.mxu0 0.0
      %689 = vmatpush2.xpose.msra.mxu0 %v561
      %690 = vmatprep.subr.mxu0 0.0
      %691 = vmatpush2.xpose.msra.mxu0 %v558
      %692 = vmatprep.subr.mxu0 0.0
      %693 = vmatpush2.xpose.msra.mxu0 %v555
      %694 = vmatprep.subr.mxu0 0.0
      %695 = vmatpush2.xpose.msra.mxu0 %v552
      %696 = vmatprep.subr.mxu0 0.0
      %697 = vmatpush2.xpose.msra.mxu0 %v549
      %698 = vmatprep.subr.mxu0 0.0
      %699 = vmatpush2.xpose.msra.mxu0 %v546
      %700 = vmatprep.subr.mxu0 0.0
      %701 = vmatpush2.xpose.msra.mxu0 %v543
      %702 = vmatprep.subr.mxu0 0.0
      %703 = vmatpush2.xpose.msra.mxu0 %v540
      %704 = vmatprep.subr.mxu0 0.0
      %705 = vmatpush2.xpose.msra.mxu0 %v537
      %706 = vmatprep.subr.mxu0 0.0
      %707 = vmatpush2.xpose.msra.mxu0 %v534
      %708 = vmatprep.subr.mxu0 0.0
      %709 = vmatpush2.xpose.msra.mxu0 %v531
      %710 = vmatprep.subr.mxu0 0.0
      %711 = vmatpush2.xpose.msra.mxu0 %v528
      %712 = vmatprep.subr.mxu0 0.0
      %713 = vmatpush2.xpose.msra.mxu0 %v525
      %714 = vmatprep.subr.mxu0 0.0
      %715 = vmatpush2.xpose.msra.mxu0 %v522
      %716 = vmatprep.mubr.f32.mxu0 0.0
      %717 = vmatmul.mubr.f32.gmra.mxu0 %v369
      %v718 = vpop.f32.mrf.mxu0
      %v719 = vadd.f32 %v355, %v718
      %v720 = vpop.f32.mrf.mxu0
      %v721 = vadd.f32 %v355, %v720
      %722 = vmatprep.mubr.f32.mxu0 0.0
      %723 = vmatmul.mubr.f32.gmra.mxu0 %v372
      %v724 = vpop.f32.mrf.mxu0
      %v725 = vadd.f32 %v360, %v724
      %v726 = vpop.f32.mrf.mxu0
      %v727 = vadd.f32 %v360, %v726
      %728 = vmatprep.mubr.f32.mxu0 0.0
      %729 = vmatmul.mubr.f32.gmra.mxu0 %v375
      %v730 = vpop.f32.mrf.mxu0
      %v731 = vadd.f32 %v365, %v730
      %v732 = vpop.f32.mrf.mxu0
      %v733 = vadd.f32 %v365, %v732
      %734 = vdwg.mxu0
      %v735 = vmax.f32 %v636, 0.0
      %v736 = vmax.f32 %v638, 0.0
      %v737 = vmax.f32 %v719, 0.0
      %v738 = vmax.f32 %v721, 0.0
      %v739 = vmax.f32 %v642, 0.0
      %v740 = vmax.f32 %v644, 0.0
      %v741 = vmax.f32 %v725, 0.0
      %v742 = vmax.f32 %v727, 0.0
      %v743 = vmax.f32 %v648, 0.0
      %v744 = vmax.f32 %v650, 0.0
      %v745 = vmax.f32 %v731, 0.0
      %v746 = vmax.f32 %v733, 0.0
      %v747 = vld [vmem:[%s3] sm:$0xff]
      %v748 = vld [vmem:[%s3 + $0x8] sm:$0xff]
      %v749 = vld [vmem:[%s3 + $0x10] sm:$0xff]
      %v750 = vld [vmem:[%s4] sm:$0xff]
      %v751 = vld [vmem:[%s4 + $0x8] sm:$0xff]
      %v752 = vld [vmem:[%s4 + $0x10] sm:$0xff]
      %754 = vset.pattern.permute.xlu0 0
      %755 = vperm.xlu0 %754, %v750
      %v756 = vpop.permute.xlu0 %755
      %759 = vset.pattern.permute.xlu0 0
      %760 = vperm.xlu0 %759, %v751
      %v761 = vpop.permute.xlu0 %760
      %764 = vset.pattern.permute.xlu0 0
      %765 = vperm.xlu0 %764, %v752
      %v766 = vpop.permute.xlu0 %765
      %vm768 = vcmask 195584
      %v770 = vsel %vm768, %v747, 0
      %v773 = vsel %vm768, %v748, 0
      %v776 = vsel %vm768, %v749, 0
      %778 = vmatprep.subr.mxu0 0.0
      %779 = vmatpush1.msra.mxu0 0.0
      %780 = vmatprep.subr.mxu0 0.0
      %781 = vmatpush1.msra.mxu0 0.0
      %782 = vmatprep.subr.mxu0 0.0
      %783 = vmatpush1.msra.mxu0 0.0
      %784 = vmatprep.subr.mxu0 0.0
      %785 = vmatpush1.msra.mxu0 0.0
      %786 = vmatprep.subr.mxu0 0.0
      %787 = vmatpush1.msra.mxu0 0.0
      %788 = vmatprep.subr.mxu0 0.0
      %789 = vmatpush1.msra.mxu0 0.0
      %790 = vmatprep.subr.mxu0 0.0
      %791 = vmatpush1.msra.mxu0 0.0
      %792 = vmatprep.subr.mxu0 0.0
      %793 = vmatpush1.msra.mxu0 0.0
      %794 = vmatprep.subr.mxu0 0.0
      %795 = vmatpush1.msra.mxu0 0.0
      %796 = vmatprep.subr.mxu0 0.0
      %797 = vmatpush1.msra.mxu0 0.0
      %798 = vmatprep.subr.mxu0 0.0
      %799 = vmatpush1.msra.mxu0 0.0
      %800 = vmatprep.subr.mxu0 0.0
      %801 = vmatpush1.msra.mxu0 0.0
      %802 = vmatprep.subr.mxu0 0.0
      %803 = vmatpush1.msra.mxu0 0.0
      %804 = vmatprep.subr.mxu0 %v744
      %805 = vmatpush1.msra.mxu0 %v743
      %806 = vmatprep.subr.mxu0 %v740
      %807 = vmatpush1.msra.mxu0 %v739
      %808 = vmatprep.subr.mxu0 %v736
      %809 = vmatpush1.msra.mxu0 %v735
      %810 = vmatprep.subr.mxu0 0.0
      %811 = vmatpush2.msra.mxu0 0.0
      %812 = vmatprep.subr.mxu0 0.0
      %813 = vmatpush2.msra.mxu0 0.0
      %814 = vmatprep.subr.mxu0 0.0
      %815 = vmatpush2.msra.mxu0 0.0
      %816 = vmatprep.subr.mxu0 0.0
      %817 = vmatpush2.msra.mxu0 0.0
      %818 = vmatprep.subr.mxu0 0.0
      %819 = vmatpush2.msra.mxu0 0.0
      %820 = vmatprep.subr.mxu0 0.0
      %821 = vmatpush2.msra.mxu0 0.0
      %822 = vmatprep.subr.mxu0 0.0
      %823 = vmatpush2.msra.mxu0 0.0
      %824 = vmatprep.subr.mxu0 0.0
      %825 = vmatpush2.msra.mxu0 0.0
      %826 = vmatprep.subr.mxu0 0.0
      %827 = vmatpush2.msra.mxu0 0.0
      %828 = vmatprep.subr.mxu0 0.0
      %829 = vmatpush2.msra.mxu0 0.0
      %830 = vmatprep.subr.mxu0 0.0
      %831 = vmatpush2.msra.mxu0 0.0
      %832 = vmatprep.subr.mxu0 0.0
      %833 = vmatpush2.msra.mxu0 0.0
      %834 = vmatprep.subr.mxu0 0.0
      %835 = vmatpush2.msra.mxu0 0.0
      %836 = vmatprep.subr.mxu0 0.0
      %837 = vmatpush2.msra.mxu0 0.0
      %838 = vmatprep.subr.mxu0 0.0
      %839 = vmatpush2.msra.mxu0 0.0
      %840 = vmatprep.subr.mxu0 0.0
      %841 = vmatpush2.msra.mxu0 0.0
      %842 = vmatprep.mubr.f32.mxu0 0.0
      %843 = vmatmul.mubr.f32.gmra.mxu0 %v770
      %v844 = vpop.f32.mrf.mxu0
      %v845 = vadd.f32 %v756, %v844
      %v846 = vpop.f32.mrf.mxu0
      %v847 = vadd.f32 %v756, %v846
      %848 = vmatprep.mubr.f32.mxu0 0.0
      %849 = vmatmul.mubr.f32.gmra.mxu0 %v773
      %v850 = vpop.f32.mrf.mxu0
      %v851 = vadd.f32 %v761, %v850
      %v852 = vpop.f32.mrf.mxu0
      %v853 = vadd.f32 %v761, %v852
      %854 = vmatprep.mubr.f32.mxu0 0.0
      %855 = vmatmul.mubr.f32.gmra.mxu0 %v776
      %v856 = vpop.f32.mrf.mxu0
      %v857 = vadd.f32 %v766, %v856
      %v858 = vpop.f32.mrf.mxu0
      %v859 = vadd.f32 %v766, %v858
      %860 = vdwg.mxu0
      %861 = vmatprep.subr.mxu0 0.0
      %862 = vmatpush1.msra.mxu0 0.0
      %863 = vmatprep.subr.mxu0 0.0
      %864 = vmatpush1.msra.mxu0 0.0
      %865 = vmatprep.subr.mxu0 0.0
      %866 = vmatpush1.msra.mxu0 0.0
      %867 = vmatprep.subr.mxu0 0.0
      %868 = vmatpush1.msra.mxu0 0.0
      %869 = vmatprep.subr.mxu0 0.0
      %870 = vmatpush1.msra.mxu0 0.0
      %871 = vmatprep.subr.mxu0 0.0
      %872 = vmatpush1.msra.mxu0 0.0
      %873 = vmatprep.subr.mxu0 0.0
      %874 = vmatpush1.msra.mxu0 0.0
      %875 = vmatprep.subr.mxu0 0.0
      %876 = vmatpush1.msra.mxu0 0.0
      %877 = vmatprep.subr.mxu0 0.0
      %878 = vmatpush1.msra.mxu0 0.0
      %879 = vmatprep.subr.mxu0 0.0
      %880 = vmatpush1.msra.mxu0 0.0
      %881 = vmatprep.subr.mxu0 0.0
      %882 = vmatpush1.msra.mxu0 0.0
      %883 = vmatprep.subr.mxu0 0.0
      %884 = vmatpush1.msra.mxu0 0.0
      %885 = vmatprep.subr.mxu0 0.0
      %886 = vmatpush1.msra.mxu0 0.0
      %887 = vmatprep.subr.mxu0 %v746
      %888 = vmatpush1.msra.mxu0 %v745
      %889 = vmatprep.subr.mxu0 %v742
      %890 = vmatpush1.msra.mxu0 %v741
      %891 = vmatprep.subr.mxu0 %v738
      %892 = vmatpush1.msra.mxu0 %v737
      %893 = vmatprep.subr.mxu0 0.0
      %894 = vmatpush2.msra.mxu0 0.0
      %895 = vmatprep.subr.mxu0 0.0
      %896 = vmatpush2.msra.mxu0 0.0
      %897 = vmatprep.subr.mxu0 0.0
      %898 = vmatpush2.msra.mxu0 0.0
      %899 = vmatprep.subr.mxu0 0.0
      %900 = vmatpush2.msra.mxu0 0.0
      %901 = vmatprep.subr.mxu0 0.0
      %902 = vmatpush2.msra.mxu0 0.0
      %903 = vmatprep.subr.mxu0 0.0
      %904 = vmatpush2.msra.mxu0 0.0
      %905 = vmatprep.subr.mxu0 0.0
      %906 = vmatpush2.msra.mxu0 0.0
      %907 = vmatprep.subr.mxu0 0.0
      %908 = vmatpush2.msra.mxu0 0.0
      %909 = vmatprep.subr.mxu0 0.0
      %910 = vmatpush2.msra.mxu0 0.0
      %911 = vmatprep.subr.mxu0 0.0
      %912 = vmatpush2.msra.mxu0 0.0
      %913 = vmatprep.subr.mxu0 0.0
      %914 = vmatpush2.msra.mxu0 0.0
      %915 = vmatprep.subr.mxu0 0.0
      %916 = vmatpush2.msra.mxu0 0.0
      %917 = vmatprep.subr.mxu0 0.0
      %918 = vmatpush2.msra.mxu0 0.0
      %919 = vmatprep.subr.mxu0 0.0
      %920 = vmatpush2.msra.mxu0 0.0
      %921 = vmatprep.subr.mxu0 0.0
      %922 = vmatpush2.msra.mxu0 0.0
      %923 = vmatprep.subr.mxu0 0.0
      %924 = vmatpush2.msra.mxu0 0.0
      %925 = vmatprep.mubr.f32.mxu0 0.0
      %926 = vmatmul.mubr.f32.gmra.mxu0 %v770
      %v927 = vpop.f32.mrf.mxu0
      %v928 = vadd.f32 %v756, %v927
      %v929 = vpop.f32.mrf.mxu0
      %v930 = vadd.f32 %v756, %v929
      %931 = vmatprep.mubr.f32.mxu0 0.0
      %932 = vmatmul.mubr.f32.gmra.mxu0 %v773
      %v933 = vpop.f32.mrf.mxu0
      %v934 = vadd.f32 %v761, %v933
      %v935 = vpop.f32.mrf.mxu0
      %v936 = vadd.f32 %v761, %v935
      %937 = vmatprep.mubr.f32.mxu0 0.0
      %938 = vmatmul.mubr.f32.gmra.mxu0 %v776
      %v939 = vpop.f32.mrf.mxu0
      %v940 = vadd.f32 %v766, %v939
      %v941 = vpop.f32.mrf.mxu0
      %v942 = vadd.f32 %v766, %v941
      %943 = vdwg.mxu0
      %v944 = vmax.f32 %v845, 0.0
      %v945 = vmax.f32 %v847, 0.0
      %v946 = vmax.f32 %v928, 0.0
      %v947 = vmax.f32 %v930, 0.0
      %v948 = vmax.f32 %v851, 0.0
      %v949 = vmax.f32 %v853, 0.0
      %v950 = vmax.f32 %v934, 0.0
      %v951 = vmax.f32 %v936, 0.0
      %v952 = vmax.f32 %v857, 0.0
      %v953 = vmax.f32 %v859, 0.0
      %v954 = vmax.f32 %v940, 0.0
      %v955 = vmax.f32 %v942, 0.0
      %v956 = vld [vmem:[%s5] sm:$0xff]
      %v957 = vld [vmem:[%s6] sm:$0xff]
      %959 = vset.pattern.permute.xlu0 0
      %960 = vperm.xlu0 %959, %v957
      %v961 = vpop.permute.xlu0 %960
      %v964 = vsel %vm768, %v956, 0
      %966 = vmatprep.subr.mxu0 0.0
      %967 = vmatpush1.msra.mxu0 0.0
      %968 = vmatprep.subr.mxu0 0.0
      %969 = vmatpush1.msra.mxu0 0.0
      %970 = vmatprep.subr.mxu0 0.0
      %971 = vmatpush1.msra.mxu0 0.0
      %972 = vmatprep.subr.mxu0 0.0
      %973 = vmatpush1.msra.mxu0 0.0
      %974 = vmatprep.subr.mxu0 0.0
      %975 = vmatpush1.msra.mxu0 0.0
      %976 = vmatprep.subr.mxu0 0.0
      %977 = vmatpush1.msra.mxu0 0.0
      %978 = vmatprep.subr.mxu0 0.0
      %979 = vmatpush1.msra.mxu0 0.0
      %980 = vmatprep.subr.mxu0 0.0
      %981 = vmatpush1.msra.mxu0 0.0
      %982 = vmatprep.subr.mxu0 0.0
      %983 = vmatpush1.msra.mxu0 0.0
      %984 = vmatprep.subr.mxu0 0.0
      %985 = vmatpush1.msra.mxu0 0.0
      %986 = vmatprep.subr.mxu0 0.0
      %987 = vmatpush1.msra.mxu0 0.0
      %988 = vmatprep.subr.mxu0 0.0
      %989 = vmatpush1.msra.mxu0 0.0
      %990 = vmatprep.subr.mxu0 0.0
      %991 = vmatpush1.msra.mxu0 0.0
      %992 = vmatprep.subr.mxu0 %v953
      %993 = vmatpush1.msra.mxu0 %v952
      %994 = vmatprep.subr.mxu0 %v949
      %995 = vmatpush1.msra.mxu0 %v948
      %996 = vmatprep.subr.mxu0 %v945
      %997 = vmatpush1.msra.mxu0 %v944
      %998 = vmatprep.subr.mxu0 0.0
      %999 = vmatpush2.msra.mxu0 0.0
      %1000 = vmatprep.subr.mxu0 0.0
      %1001 = vmatpush2.msra.mxu0 0.0
      %1002 = vmatprep.subr.mxu0 0.0
      %1003 = vmatpush2.msra.mxu0 0.0
      %1004 = vmatprep.subr.mxu0 0.0
      %1005 = vmatpush2.msra.mxu0 0.0
      %1006 = vmatprep.subr.mxu0 0.0
      %1007 = vmatpush2.msra.mxu0 0.0
      %1008 = vmatprep.subr.mxu0 0.0
      %1009 = vmatpush2.msra.mxu0 0.0
      %1010 = vmatprep.subr.mxu0 0.0
      %1011 = vmatpush2.msra.mxu0 0.0
      %1012 = vmatprep.subr.mxu0 0.0
      %1013 = vmatpush2.msra.mxu0 0.0
      %1014 = vmatprep.subr.mxu0 0.0
      %1015 = vmatpush2.msra.mxu0 0.0
      %1016 = vmatprep.subr.mxu0 0.0
      %1017 = vmatpush2.msra.mxu0 0.0
      %1018 = vmatprep.subr.mxu0 0.0
      %1019 = vmatpush2.msra.mxu0 0.0
      %1020 = vmatprep.subr.mxu0 0.0
      %1021 = vmatpush2.msra.mxu0 0.0
      %1022 = vmatprep.subr.mxu0 0.0
      %1023 = vmatpush2.msra.mxu0 0.0
      %1024 = vmatprep.subr.mxu0 0.0
      %1025 = vmatpush2.msra.mxu0 0.0
      %1026 = vmatprep.subr.mxu0 0.0
      %1027 = vmatpush2.msra.mxu0 0.0
      %1028 = vmatprep.subr.mxu0 0.0
      %1029 = vmatpush2.msra.mxu0 0.0
      %1030 = vmatprep.mubr.f32.mxu0 0.0
      %1031 = vmatmul.mubr.f32.gmra.mxu0 %v964
      %v1032 = vpop.f32.mrf.mxu0
      %v1033 = vadd.f32 %v961, %v1032
      %v1034 = vpop.f32.mrf.mxu0
      %v1035 = vadd.f32 %v961, %v1034
      %1036 = vdwg.mxu0
      %1037 = vmatprep.subr.mxu0 0.0
      %1038 = vmatpush1.msra.mxu0 0.0
      %1039 = vmatprep.subr.mxu0 0.0
      %1040 = vmatpush1.msra.mxu0 0.0
      %1041 = vmatprep.subr.mxu0 0.0
      %1042 = vmatpush1.msra.mxu0 0.0
      %1043 = vmatprep.subr.mxu0 0.0
      %1044 = vmatpush1.msra.mxu0 0.0
      %1045 = vmatprep.subr.mxu0 0.0
      %1046 = vmatpush1.msra.mxu0 0.0
      %1047 = vmatprep.subr.mxu0 0.0
      %1048 = vmatpush1.msra.mxu0 0.0
      %1049 = vmatprep.subr.mxu0 0.0
      %1050 = vmatpush1.msra.mxu0 0.0
      %1051 = vmatprep.subr.mxu0 0.0
      %1052 = vmatpush1.msra.mxu0 0.0
      %1053 = vmatprep.subr.mxu0 0.0
      %1054 = vmatpush1.msra.mxu0 0.0
      %1055 = vmatprep.subr.mxu0 0.0
      %1056 = vmatpush1.msra.mxu0 0.0
      %1057 = vmatprep.subr.mxu0 0.0
      %1058 = vmatpush1.msra.mxu0 0.0
      %1059 = vmatprep.subr.mxu0 0.0
      %1060 = vmatpush1.msra.mxu0 0.0
      %1061 = vmatprep.subr.mxu0 0.0
      %1062 = vmatpush1.msra.mxu0 0.0
      %1063 = vmatprep.subr.mxu0 %v955
      %1064 = vmatpush1.msra.mxu0 %v954
      %1065 = vmatprep.subr.mxu0 %v951
      %1066 = vmatpush1.msra.mxu0 %v950
      %1067 = vmatprep.subr.mxu0 %v947
      %1068 = vmatpush1.msra.mxu0 %v946
      %1069 = vmatprep.subr.mxu0 0.0
      %1070 = vmatpush2.msra.mxu0 0.0
      %1071 = vmatprep.subr.mxu0 0.0
      %1072 = vmatpush2.msra.mxu0 0.0
      %1073 = vmatprep.subr.mxu0 0.0
      %1074 = vmatpush2.msra.mxu0 0.0
      %1075 = vmatprep.subr.mxu0 0.0
      %1076 = vmatpush2.msra.mxu0 0.0
      %1077 = vmatprep.subr.mxu0 0.0
      %1078 = vmatpush2.msra.mxu0 0.0
      %1079 = vmatprep.subr.mxu0 0.0
      %1080 = vmatpush2.msra.mxu0 0.0
      %1081 = vmatprep.subr.mxu0 0.0
      %1082 = vmatpush2.msra.mxu0 0.0
      %1083 = vmatprep.subr.mxu0 0.0
      %1084 = vmatpush2.msra.mxu0 0.0
      %1085 = vmatprep.subr.mxu0 0.0
      %1086 = vmatpush2.msra.mxu0 0.0
      %1087 = vmatprep.subr.mxu0 0.0
      %1088 = vmatpush2.msra.mxu0 0.0
      %1089 = vmatprep.subr.mxu0 0.0
      %1090 = vmatpush2.msra.mxu0 0.0
      %1091 = vmatprep.subr.mxu0 0.0
      %1092 = vmatpush2.msra.mxu0 0.0
      %1093 = vmatprep.subr.mxu0 0.0
      %1094 = vmatpush2.msra.mxu0 0.0
      %1095 = vmatprep.subr.mxu0 0.0
      %1096 = vmatpush2.msra.mxu0 0.0
      %1097 = vmatprep.subr.mxu0 0.0
      %1098 = vmatpush2.msra.mxu0 0.0
      %1099 = vmatprep.subr.mxu0 0.0
      %1100 = vmatpush2.msra.mxu0 0.0
      %1101 = vmatprep.mubr.f32.mxu0 0.0
      %1102 = vmatmul.mubr.f32.gmra.mxu0 %v964
      %v1103 = vpop.f32.mrf.mxu0
      %v1104 = vadd.f32 %v961, %v1103
      %v1105 = vpop.f32.mrf.mxu0
      %v1106 = vadd.f32 %v961, %v1105
      %1107 = vdwg.mxu0
      %1108 = vst [vmem:[%s280] sm:$0xff] %v1033
      %1109 = vst [vmem:[%s280 + $0x8] sm:$0xff] %v1035
      %1110 = vst [vmem:[%s280 + $0x10] sm:$0xff] %v1104
      %1111 = vst [vmem:[%s280 + $0x18] sm:$0xff] %v1106
      %s1112 = smul.u32 4, %s18
      %p1113 = scmp.lt.s32.totalorder %s1112, 7
      %s1114 = scalar_select %p1113, %s1112, 7
      %s1115 = smul.addr %s1114, 8
      %s1116 = scalar_lea.vmem %s7, %s1115
      // Predicated region
      $region49: #{qnet_forward.1} parent=47 // pred_check
        %p1117 = pneg %p188
      $region50: #{qnet_forward.1} parent=47 // pred_check_branch
        %1119 = sbr.rel (%p1117) target = $region52
      $region51: #{qnet_forward.1} parent=47 // pred_region
        %s1120 = smul.u32 4, %s18
      $region52: #{qnet_forward.1} parent=47 // pred_fallthru
        _
    $region48: #{qnet_forward.1} parent=5 // pred_fallthru
      _
    %p1121 = scmp.le.s32.totalorder 2, %s13
    // Predicated region
    $region53: #{qnet_forward.1} parent=5 // pred_check
      %p1122 = pneg %p1121
    $region54: #{qnet_forward.1} parent=5 // pred_check_branch
      %1124 = sbr.rel (%p1122) target = $region56
    $region55: #{qnet_forward.1} parent=5 // pred_region
      %s1125 = ssub.s32 %s13, 2
      // Predicated region
      $region57: #{qnet_forward.1} parent=55 // pred_check
        %p1126 = pneg %p194
      $region58: #{qnet_forward.1} parent=55 // pred_check_branch
        %1128 = sbr.rel (%p1126) target = $region60
      $region59: #{qnet_forward.1} parent=55 // pred_region
        %s1129 = smul.u32 4, %s19
        %p1130 = scmp.lt.s32.totalorder %s1129, 7
        %s1131 = scalar_select %p1130, %s1129, 7
        %s1132 = smul.addr %s1131, 8
        %s1133 = scalar_lea.vmem %s7, %s1132
      $region60: #{qnet_forward.1} parent=55 // pred_fallthru
        _
    $region56: #{qnet_forward.1} parent=5 // pred_fallthru
      _
  $region6: #{qnet_forward.1} parent=0 // loop_footer
    %s17 = sadd.s32 1, %s13
  $region7: #{qnet_forward.1} parent=0 // loop_footer_branch
    %12 = sbr.rel target = $region3
  $region8: #{qnet_forward.1} parent=0 // loop_exit
    _

</llo_original>
